<compile_context>
chip_gen: v5e
topology: v5e:2x2
jax: 0.10.0
libtpu: 0.0.40
codegen_flags: <defaults>
</compile_context>

<pallas_src>
import functools

import jax
import jax.numpy as jnp
from jax.experimental import pallas as pl
from jax.experimental.pallas import tpu as pltpu

LANES = 128


def _round_up(x, m):
    return (x + m - 1) // m * m


def _mse_sum_kernel(pred_ref, tgt_ref, psum_ref, *, rows, rows_per_tile,
                    inner, needs_mask):
    c = pl.program_id(0)   # core-split index ("parallel")
    i = pl.program_id(1)   # row-tile index within this core's range ("arbitrary")

    @pl.when(i == 0)
    def _():
        psum_ref[...] = jnp.zeros_like(psum_ref)

    d = pred_ref[...].astype(jnp.float32) - tgt_ref[...].astype(jnp.float32)
    sq = d * d

    if needs_mask:
        # Unclamped logical tile index.  The index_map clamps the block index
        # so the DMA stays in bounds; phantom tiles and the garbage rows of a
        # partial edge tile are zeroed out by this mask.
        tile_idx = c * inner + i
        row0 = tile_idx * rows_per_tile
        row_ids = jax.lax.broadcasted_iota(
            jnp.int32, (rows_per_tile, LANES), 0)
        sq = jnp.where((row0 + row_ids) < rows, sq, 0.0)

    # Fold (rows_per_tile, 128) -> (8, 128): sublane-aligned VPU adds only
    # (each (8, 128) f32 slab is one vreg); the cross-lane / cross-sublane
    # reduction happens outside the kernel.
    partial = jnp.sum(sq.reshape(rows_per_tile // 8, 8, LANES), axis=0)
    psum_ref[...] += partial.reshape(1, 8, LANES)


def simple_mse_loss(pred, target, *, rows_per_tile=4096, num_core_splits=2):
    """mean((pred - target)**2) over all elements, like nn.MSELoss('mean')."""
    assert pred.shape == target.shape, "MSELoss requires matching shapes"
    n_elems = pred.size
    if n_elems == 0:
        return jnp.float32(0.0)

    pred_f = pred.reshape(-1)
    tgt_f = target.reshape(-1)

    # Ragged tail (< 128 elements): handled in plain JAX, so the kernel inputs
    # never need host-side zero-padding.
    n_main = (n_elems // LANES) * LANES
    if n_main != n_elems:
        td = (pred_f[n_main:].astype(jnp.float32)
              - tgt_f[n_main:].astype(jnp.float32))
        tail_sum = jnp.sum(td * td)
    else:
        tail_sum = jnp.float32(0.0)

    if n_main == 0:
        return tail_sum / jnp.float32(n_elems)

    rows = n_main // LANES
    itemsize = jnp.dtype(pred.dtype).itemsize
    # dtype-aware sublane packing: f32 -> 8, bf16 -> 16, int8/fp8 -> 32.
    sublane = {4: 8, 2: 16, 1: 32}.get(itemsize, 8)

    # Tile size: as large as practical (HBM-bandwidth bound) while
    # 2 inputs x 2 pipeline buffers stay under ~12 MiB of scoped VMEM.
    per_row_bytes = 2 * 2 * LANES * itemsize
    cap_rows = max(sublane, ((12 << 20) // per_row_bytes) // sublane * sublane)
    rpt = max(1, min(rows_per_tile, rows, cap_rows))
    rpt = _round_up(rpt, sublane)
    rpt = _round_up(rpt, 8)          # needed for the (rpt//8, 8, 128) fold

    n_blocks = pl.cdiv(rows, rpt)
    n_split = max(1, min(num_core_splits, n_blocks))
    inner = pl.cdiv(n_blocks, n_split)

    # Copy-free reshape when aligned; for ragged sizes only the main body is
    # sliced (tail is <128 elements and summed above).
    if n_main == n_elems:
        pred2d = pred_f.reshape(rows, LANES)
        tgt2d = tgt_f.reshape(rows, LANES)
    else:
        pred2d = pred_f[:n_main].reshape(rows, LANES)
        tgt2d = tgt_f[:n_main].reshape(rows, LANES)

    exact_rows = (rows % rpt == 0) and (rows >= rpt)
    exact_split = (n_split * inner == n_blocks)
    needs_mask = not (exact_rows and exact_split)

    if exact_split:
        def in_index_map(c, i):
            return (c * inner + i, 0)
    else:
        last_block = n_blocks - 1

        def in_index_map(c, i):
            # Clamp so phantom tiles re-read the last real block (DMA stays in
            # bounds); the in-kernel mask zeroes their contribution.
            return (jnp.minimum(c * inner + i, last_block), 0)

    cost = pl.CostEstimate(
        flops=3 * n_main,
        transcendentals=0,
        bytes_accessed=2 * n_main * itemsize + n_split * 8 * LANES * 4,
    )

    partials = pl.pallas_call(
        functools.partial(_mse_sum_kernel, rows=rows, rows_per_tile=rpt,
                          inner=inner, needs_mask=needs_mask),
        out_shape=jax.ShapeDtypeStruct((n_split, 8, LANES), jnp.float32),
        grid_spec=pltpu.PrefetchScalarGridSpec(
            num_scalar_prefetch=0,
            grid=(n_split, inner),
            in_specs=[
                pl.BlockSpec((rpt, LANES), in_index_map),
                pl.BlockSpec((rpt, LANES), in_index_map),
            ],
            out_specs=pl.BlockSpec((1, 8, LANES), lambda c, i: (c, 0, 0)),
            scratch_shapes=[],
        ),
        compiler_params=pltpu.CompilerParams(
            dimension_semantics=("parallel", "arbitrary")),
        cost_estimate=cost,
    )(pred2d, tgt2d)

    return (jnp.sum(partials) + tail_sum) / jnp.float32(n_elems)


if __name__ == "__main__":
    key = jax.random.PRNGKey(0)
    k1, k2 = jax.random.split(key)

    # NCHW-like profiles, small shapes.
    shape = (2, 4, 16, 16)
    pred = jax.random.normal(k1, shape, dtype=jnp.float32)
    target = jax.random.normal(k2, shape, dtype=jnp.float32)

    loss = simple_mse_loss(pred, target)
    jax.block_until_ready(loss)
    ref = jnp.mean((pred - target) ** 2)
    assert jnp.allclose(loss, ref, rtol=1e-5, atol=1e-6), (loss, ref)

    # Unaligned shape: exercises the in-kernel row mask and the ragged-tail
    # path (no padded copies anywhere).
    k3, k4 = jax.random.split(k2)
    p2 = jax.random.normal(k3, (3, 5, 7, 11), dtype=jnp.float32)
    t2 = jax.random.normal(k4, (3, 5, 7, 11), dtype=jnp.float32)
    loss2 = simple_mse_loss(p2, t2)
    jax.block_until_ready(loss2)
    ref2 = jnp.mean((p2 - t2) ** 2)
    assert jnp.allclose(loss2, ref2, rtol=1e-5, atol=1e-6), (loss2, ref2)

    # Force the 2-way core split + multi-tile accumulation + phantom-tile
    # clamping paths with a tiny tile size (semantics unchanged).
    k5, k6 = jax.random.split(k4)
    p3 = jax.random.normal(k5, (3, 8, 128), dtype=jnp.float32)
    t3 = jax.random.normal(k6, (3, 8, 128), dtype=jnp.float32)
    loss3 = simple_mse_loss(p3, t3, rows_per_tile=8)
    jax.block_until_ready(loss3)
    ref3 = jnp.mean((p3 - t3) ** 2)
    assert jnp.allclose(loss3, ref3, rtol=1e-5, atol=1e-6), (loss3, ref3)

    # bf16 inputs: exercises the dtype-aware sublane packing + f32 accumulation.
    k7, k8 = jax.random.split(k6)
    p4 = jax.random.normal(k7, (4, 8, 128), dtype=jnp.bfloat16)
    t4 = jax.random.normal(k8, (4, 8, 128), dtype=jnp.bfloat16)
    loss4 = simple_mse_loss(p4, t4)
    jax.block_until_ready(loss4)
    ref4 = jnp.mean((p4.astype(jnp.float32) - t4.astype(jnp.float32)) ** 2)
    assert jnp.allclose(loss4, ref4, rtol=1e-2, atol=1e-3), (loss4, ref4)

    print("KERNEL_OK")
</pallas_src>

<mosaic_0001>
module attributes {stable_mosaic.version = 11 : i64} {
  func.func @_mse_sum_kernel(%arg0: i32, %arg1: i32, %arg2: memref<16x128xf32, #tpu.memory_space<vmem>>, %arg3: memref<16x128xf32, #tpu.memory_space<vmem>>, %arg4: memref<1x8x128xf32, #tpu.memory_space<vmem>>) attributes {dimension_semantics = [#tpu.dimension_semantics<parallel>, #tpu.dimension_semantics<arbitrary>], iteration_bounds = array<i64: 1, 1>, scalar_prefetch = 0 : i64, scratch_operands = 0 : i64, tpu.core_type = #tpu.core_type<tc>, window_params = [{transform_indices = @transform_0, window_bounds = array<i64: 16, 128>}, {transform_indices = @transform_1, window_bounds = array<i64: 16, 128>}, {transform_indices = @transform_2, window_bounds = array<i64: 1, 8, 128>}]} {
    %c0_i32 = arith.constant 0 : i32
    %0 = arith.cmpi eq, %arg1, %c0_i32 : i32
    %1 = arith.extui %0 : i1 to i32
    %c0_i32_0 = arith.constant 0 : i32
    %2 = arith.cmpi ne, %1, %c0_i32_0 : i32
    scf.if %2 {
      %cst_10 = arith.constant 0.000000e+00 : f32
      %13 = vector.broadcast %cst_10 : f32 to vector<1x8x128xf32>
      %c0_11 = arith.constant 0 : index
      %c0_12 = arith.constant 0 : index
      %c0_13 = arith.constant 0 : index
      %14 = vector.load %arg4[%c0_11, %c0_12, %c0_13] : memref<1x8x128xf32, #tpu.memory_space<vmem>>, vector<1x8x128xf32>
      tpu.vector_store %arg4[%c0_11, %c0_12, %c0_13], %13 {strides = array<i32>} : memref<1x8x128xf32, #tpu.memory_space<vmem>>, vector<1x8x128xf32>,
    } else {
    }
    %c0 = arith.constant 0 : index
    %c0_1 = arith.constant 0 : index
    %3 = vector.load %arg2[%c0, %c0_1] : memref<16x128xf32, #tpu.memory_space<vmem>>, vector<16x128xf32>
    %c0_2 = arith.constant 0 : index
    %c0_3 = arith.constant 0 : index
    %4 = vector.load %arg3[%c0_2, %c0_3] : memref<16x128xf32, #tpu.memory_space<vmem>>, vector<16x128xf32>
    %5 = arith.subf %3, %4 : vector<16x128xf32>
    %6 = arith.mulf %5, %5 : vector<16x128xf32>
    %7 = vector.shape_cast %6 : vector<16x128xf32> to vector<2x8x128xf32>
    %cst = arith.constant dense<0.000000e+00> : vector<8x128xf32>
    %8 = vector.multi_reduction <add>, %7, %cst [0] : vector<2x8x128xf32> to vector<8x128xf32>
    %c0_4 = arith.constant 0 : index
    %c0_5 = arith.constant 0 : index
    %c0_6 = arith.constant 0 : index
    %9 = vector.load %arg4[%c0_4, %c0_5, %c0_6] : memref<1x8x128xf32, #tpu.memory_space<vmem>>, vector<1x8x128xf32>
    %10 = vector.shape_cast %8 : vector<8x128xf32> to vector<1x8x128xf32>
    %11 = arith.addf %9, %10 : vector<1x8x128xf32>
    %c0_7 = arith.constant 0 : index
    %c0_8 = arith.constant 0 : index
    %c0_9 = arith.constant 0 : index
    %12 = vector.load %arg4[%c0_7, %c0_8, %c0_9] : memref<1x8x128xf32, #tpu.memory_space<vmem>>, vector<1x8x128xf32>
    tpu.vector_store %arg4[%c0_7, %c0_8, %c0_9], %11 {strides = array<i32>} : memref<1x8x128xf32, #tpu.memory_space<vmem>>, vector<1x8x128xf32>,
    return
  }
  func.func @transform_0(%arg0: i32, %arg1: i32) -> (i32, i32) {
    %c1_i32 = arith.constant 1 : i32
    %0 = arith.muli %arg0, %c1_i32 : i32
    %1 = arith.addi %0, %arg1 : i32
    %c0_i32 = arith.constant 0 : i32
    %c0_i32_0 = arith.constant 0 : i32
    return %1, %c0_i32 : i32, i32
  }
  func.func @transform_1(%arg0: i32, %arg1: i32) -> (i32, i32) {
    %c1_i32 = arith.constant 1 : i32
    %0 = arith.muli %arg0, %c1_i32 : i32
    %1 = arith.addi %0, %arg1 : i32
    %c0_i32 = arith.constant 0 : i32
    %c0_i32_0 = arith.constant 0 : i32
    return %1, %c0_i32 : i32, i32
  }
  func.func @transform_2(%arg0: i32, %arg1: i32) -> (i32, i32, i32) {
    %c0_i32 = arith.constant 0 : i32
    %c0_i32_0 = arith.constant 0 : i32
    %c0_i32_1 = arith.constant 0 : i32
    return %arg0, %c0_i32, %c0_i32_0 : i32, i32, i32
  }
}

</mosaic_0001>

<llo_original>
// kernel: tpu_custom_call.1
$region0: #{tpu_custom_call.1}
  #allocation0 [shape = 'u32[]', space=smem, size = 0x4, offset = 0x4, fixed_abs, tag = 'smem constant byte address 0x4 - core index']
  #allocation1 [shape = 'u32[72,128]{1,0:T(1,128)}', space=vmem, size = 0x9000, scoped, tag = 'internal scratch']
  %s0 = inlined_call_operand.hbm [shape: f32[16,128], index: 0, kind: input, shape index: {}]
  %s1 = inlined_call_operand.hbm [shape: f32[16,128], index: 1, kind: input, shape index: {}]
  %s2 = inlined_call_operand.hbm [shape: f32[1,8,128], index: 2, kind: output, shape index: {}]
  %s3 = sld [smem:[#allocation0]]
  $region30: #{tpu_custom_call.1} parent=0
    _
  %s5 = ssub.s32 1, %s3
  %s6 = scalar_select 0, %s5, %s3
  $region1: #{tpu_custom_call.1} parent=0
    #allocation2 [shape = 'u8[8192]{0}', space=vmem, size = 0x2000, scoped, tag = 'input window, operand 0, single buffered']
    #allocation3 [shape = 's32[1]{0}', space=sflag, size = 0x4, scoped, tag = 'scoped memory for tpu_custom_call.1']
    #allocation4 [shape = 's32[1]{0}', space=sflag, size = 0x4, scoped, tag = 'scoped memory for tpu_custom_call.1']
    #allocation5 [shape = 'u8[8192]{0}', space=vmem, size = 0x2000, scoped, tag = 'input window, operand 1, single buffered']
    #allocation6 [shape = 's32[1]{0}', space=sflag, size = 0x4, scoped, tag = 'scoped memory for tpu_custom_call.1']
    #allocation7 [shape = 'u8[4096]{0}', space=vmem, size = 0x1000, scoped, tag = 'output window, operand 0, single buffered']
    %7 = vsyncpa [#allocation3], 0
    %8 = vsyncpa [#allocation6], 0
    %9 = vsyncpa [#allocation4], 0
    // Predicated region
    $region2: #{tpu_custom_call.1} parent=1 // pred_check
      _
    $region3: #{tpu_custom_call.1} parent=1 // pred_check_branch
      %11 = sbr.rel (0) target = $region5
    $region4: #{tpu_custom_call.1} parent=1 // pred_region
      %s12 = sadd.s32 0, 0
      %s13 = smul.u32 2, %s12
      %15 = vsyncadd [#allocation3], 0
      %s16 = smul.addr %s13, 8
      %s17 = scalar_lea.hbm %s0, %s16
      %s18 = sshll.u32 %s17, 4
      %s19 = int_to_ptr.hbm [resolvable:$true] %s18
      %s20 = sshll.u32 [#allocation2], 4
      %s21 = int_to_ptr.vmem [resolvable:$true] %s20
      %26 = dma.hbm_to_vmem [thread:$0]  %s19, 256, %s21, [#allocation3], 128, 128, 8
    $region5: #{tpu_custom_call.1} parent=1 // pred_fallthru
      _
    // Predicated region
    $region6: #{tpu_custom_call.1} parent=1 // pred_check
      _
    $region7: #{tpu_custom_call.1} parent=1 // pred_check_branch
      %28 = sbr.rel (0) target = $region9
    $region8: #{tpu_custom_call.1} parent=1 // pred_region
      %s29 = sadd.s32 0, 0
      %s30 = smul.u32 2, %s29
      %32 = vsyncadd [#allocation6], 0
      %s33 = smul.addr %s30, 8
      %s34 = scalar_lea.hbm %s1, %s33
      %s35 = sshll.u32 %s34, 4
      %s36 = int_to_ptr.hbm [resolvable:$true] %s35
      %s37 = sshll.u32 [#allocation5], 4
      %s38 = int_to_ptr.vmem [resolvable:$true] %s37
      %43 = dma.hbm_to_vmem [thread:$0]  %s36, 256, %s38, [#allocation6], 128, 128, 8
    $region9: #{tpu_custom_call.1} parent=1 // pred_fallthru
      _
    // Predicated region
    $region10: #{tpu_custom_call.1} parent=1 // pred_check
      _
    $region11: #{tpu_custom_call.1} parent=1 // pred_check_branch
      %45 = sbr.rel (0) target = $region13
    $region12: #{tpu_custom_call.1} parent=1 // pred_region
      %47 = dma.done [#allocation3], 256
    $region13: #{tpu_custom_call.1} parent=1 // pred_fallthru
      _
    // Predicated region
    $region14: #{tpu_custom_call.1} parent=1 // pred_check
      _
    $region15: #{tpu_custom_call.1} parent=1 // pred_check_branch
      %49 = sbr.rel (0) target = $region17
    $region16: #{tpu_custom_call.1} parent=1 // pred_region
      %51 = dma.done [#allocation6], 256
    $region17: #{tpu_custom_call.1} parent=1 // pred_fallthru
      _
    %s52 = sadd.s32 0, 0
    %s53 = smul.u32 2, %s52
    %s54 = sadd.s32 0, 0
    %s55 = smul.u32 2, %s54
    %p56 = scmp.eq.s32.totalorder 0, 0
    // Predicated region
    $region18: #{tpu_custom_call.1} parent=1 // pred_check
      %p57 = pneg %p56
    $region19: #{tpu_custom_call.1} parent=1 // pred_check_branch
      %59 = sbr.rel (%p57) target = $region21
    $region20: #{tpu_custom_call.1} parent=1 // pred_region
      %60 = vst [vmem:[#allocation7] sm:$0xff] 0.0
    $region21: #{tpu_custom_call.1} parent=1 // pred_fallthru
      _
    %v61 = vld [vmem:[#allocation2] sm:$0xff]
    %v62 = vld [vmem:[#allocation2 + $0x8] sm:$0xff]
    %v63 = vld [vmem:[#allocation5] sm:$0xff]
    %v64 = vld [vmem:[#allocation5 + $0x8] sm:$0xff]
    %v65 = vsub.f32 %v61, %v63
    %v66 = vsub.f32 %v62, %v64
    %v67 = vmul.f32 %v65, %v65
    %v68 = vmul.f32 %v66, %v66
    %v69 = vadd.f32 %v67, %v68
    %v70 = vld [vmem:[#allocation7] sm:$0xff]
    %v71 = vadd.f32 %v70, %v69
    %72 = vst [vmem:[#allocation7] sm:$0xff] %v71
    // Predicated region
    $region22: #{tpu_custom_call.1} parent=1 // pred_check
      _
    $region23: #{tpu_custom_call.1} parent=1 // pred_check_branch
      %74 = sbr.rel (0) target = $region25
    $region24: #{tpu_custom_call.1} parent=1 // pred_region
      %76 = vsyncadd [#allocation4], 0
      %s78 = sshll.u32 [#allocation7], 4
      %s79 = int_to_ptr.vmem [resolvable:$true] %s78
      %s80 = sshll.u32 %s2, 4
      %s81 = int_to_ptr.hbm [resolvable:$true] %s80
      %83 = dma.vmem_to_hbm [thread:$0]  %s79, 128, %s81, [#allocation4]
    $region25: #{tpu_custom_call.1} parent=1 // pred_fallthru
      _
    // Predicated region
    $region26: #{tpu_custom_call.1} parent=1 // pred_check
      _
    $region27: #{tpu_custom_call.1} parent=1 // pred_check_branch
      %85 = sbr.rel (0) target = $region29
    $region28: #{tpu_custom_call.1} parent=1 // pred_region
      %87 = dma.done [#allocation4], 128
    $region29: #{tpu_custom_call.1} parent=1 // pred_fallthru
      _
    %88 = vsyncpa [#allocation3], 1
    %89 = vsyncpa [#allocation6], 1
    %90 = vsyncpa [#allocation4], 1

</llo_original>
